<compile_context>
chip_gen: v7x
topology: tpu7x:2x2x1
jax: 0.10.0
libtpu: 0.0.40
codegen_flags: <defaults>
</compile_context>

<pallas_src>
import functools

import jax
import jax.numpy as jnp
from jax.experimental import pallas as pl
from jax.experimental.pallas import tpu as pltpu


USERCO = (1, 3, 5, 7, 8)
USERCA = (0, 1, 2, 3, 5, 6, 7, 8, 10, 11, 12)
FIRST_DIM = len(USERCO) + len(USERCA)   # 16


def _round_up(x, m):
    return ((x + m - 1) // m) * m


def _pick_tm(batch):
    """One big tile when the whole batch fits; cap at 1024 rows (per-step VMEM
    at that size is still only a few MiB on every TPU generation)."""
    return min(1024, _round_up(batch, 8))


# -----------------------------------------------------------------------------
# Kernel: Deep 4-layer MLP + fused final fc.  All matmuls on the MXU with bf16
# operands / f32 accumulation; bias + ReLU on the VPU in f32.
# -----------------------------------------------------------------------------
def _userfm_kernel(side_ref, deep_ref,
                   w1_ref, b1_ref, w2_ref, b2_ref, w3_ref, b3_ref,
                   w4_ref, b4_ref,
                   wside_ref, wdeepfc_ref, bout_ref,
                   o_ref):
    f32 = jnp.float32

    # ---- Deep MLP: single layer-1 matmul over the concatenated [c|i|t] input.
    h = jnp.dot(deep_ref[...], w1_ref[...], preferred_element_type=f32) + b1_ref[...]
    h = jnp.maximum(h, 0.0)
    h = jnp.dot(h.astype(w2_ref.dtype), w2_ref[...],
                preferred_element_type=f32) + b2_ref[...]
    h = jnp.maximum(h, 0.0)
    h = jnp.dot(h.astype(w3_ref.dtype), w3_ref[...],
                preferred_element_type=f32) + b3_ref[...]
    h = jnp.maximum(h, 0.0)
    deep_v = jnp.dot(h.astype(w4_ref.dtype), w4_ref[...],
                     preferred_element_type=f32) + b4_ref[...]

    # ---- Final fc: side path (folded first-order + FM term) is one narrow
    # K=(16+E) matmul; deep path is one K=Ep matmul; b_first*wfc0 + b_fc are
    # pre-folded into bout.
    out = (jnp.dot(side_ref[...], wside_ref[...], preferred_element_type=f32)
           + jnp.dot(deep_v.astype(wdeepfc_ref.dtype), wdeepfc_ref[...],
                     preferred_element_type=f32)
           + bout_ref[...])
    o_ref[...] = out.astype(o_ref.dtype)


# -----------------------------------------------------------------------------
# One-time weight preparation (padding, bf16 casts, first-order folding).
# -----------------------------------------------------------------------------
def prepare_userfm_weights(params, *, embedding_size, matmul_dtype=jnp.bfloat16):
    E = embedding_size
    Ep = _round_up(E, 128)        # output / fc lanes
    Kp = _round_up(3 * E, 128)    # deep input & hidden lanes
    S = FIRST_DIM + E             # narrow "side" input width
    f32 = jnp.float32

    def pad2(a, rows, cols, dtype):
        a = jnp.asarray(a, dtype)
        return jnp.pad(a, ((0, rows - a.shape[0]), (0, cols - a.shape[1])))

    wfc = jnp.asarray(params["w_fc"], f32)                    # (2E+1, E), (in,out)
    w_first = jnp.asarray(params["w_first"], f32).reshape(FIRST_DIM, 1)
    # Fold the first-order linear and its fc column into one (16, E) matrix,
    # and fold b_first * wfc[0] + b_fc into a single output bias.
    w_fold = w_first @ wfc[0:1]                               # (16, E)
    w_side = jnp.concatenate([w_fold, wfc[1:1 + E]], axis=0)  # (16+E, E)
    b_out = (jnp.asarray(params["b_fc"], f32).reshape(1, E)
             + jnp.asarray(params["b_first"], f32) * wfc[0:1])

    return {
        "w1": pad2(params["w1"], Kp, Kp, matmul_dtype),
        "b1": pad2(params["b1"], 1, Kp, f32),
        "w2": pad2(params["w2"], Kp, Kp, matmul_dtype),
        "b2": pad2(params["b2"], 1, Kp, f32),
        "w3": pad2(params["w3"], Kp, Kp, matmul_dtype),
        "b3": pad2(params["b3"], 1, Kp, f32),
        "w4": pad2(params["w4"], Kp, Ep, matmul_dtype),
        "b4": pad2(params["b4"], 1, Ep, f32),
        "w_side": pad2(w_side, S, Ep, matmul_dtype),
        "w_deepfc": pad2(wfc[1 + E:1 + 2 * E], Ep, Ep, matmul_dtype),
        "b_out": pad2(b_out, 1, Ep, f32),
    }


# -----------------------------------------------------------------------------
# Forward: JAX preamble (gather/mean + FM interaction) + one fused Pallas call.
# -----------------------------------------------------------------------------
def userfm_forward(co_xv, ca_xv, ca_xi, params, prepped, *, embedding_size,
                   tm=None, matmul_dtype=jnp.bfloat16):
    E = embedding_size
    B = co_xv.shape[0]
    f32 = jnp.float32
    Ep = _round_up(E, 128)
    Kp = _round_up(3 * E, 128)
    S = FIRST_DIM + E

    # ---- plain-JAX preamble ------------------------------------------------
    # TODO(synk): the embedding gather + mean is a per-row data-dependent
    # gather with no clean BlockSpec equivalent; it stays in JAX.  The FM
    # second-order term is computed here too (it fuses with the gather/mean
    # and keeps the kernel free of 8x-padded VPU work).
    first_x = jnp.concatenate(
        [co_xv[:, jnp.array(USERCO)].astype(f32),
         ca_xv[:, jnp.array(USERCA)].astype(f32)], axis=1)              # (B, 16)
    city = jnp.take(params["emb_city"], ca_xi[:, 0:4], axis=0).mean(axis=1)
    industry = jnp.take(params["emb_industry"], ca_xi[:, 5:9], axis=0).mean(axis=1)
    typ = jnp.take(params["emb_type"], ca_xi[:, 10:13], axis=0).mean(axis=1)

    summed = city + industry + typ
    second_v = 0.5 * (summed * summed
                      - (city * city + industry * industry + typ * typ))  # (B, E)

    deep_x = jnp.concatenate([city, industry, typ], axis=1)               # (B, 3E)
    side_x = jnp.concatenate([first_x, second_v], axis=1)                 # (B, 16+E)

    # ---- batch tiling / padding ---------------------------------------------
    if tm is None:
        tm = _pick_tm(B)
    tm = _round_up(min(tm, _round_up(B, 8)), 8)
    Bp = _round_up(B, tm)
    grid = (Bp // tm,)

    def padb(a, cols, dtype):
        a = jnp.asarray(a, dtype)
        return jnp.pad(a, ((0, Bp - a.shape[0]), (0, cols - a.shape[1])))

    side_in = padb(side_x, S, matmul_dtype)   # narrow last dim == full array dim
    deep_in = padb(deep_x, Kp, matmul_dtype)  # lane-dense 128-multiple

    def batch_spec(cols):
        return pl.BlockSpec((tm, cols), lambda g: (g, 0))

    def const_spec(shape):
        # constant index_map -> weights stay VMEM-resident across grid steps.
        return pl.BlockSpec(shape, lambda g: (0, 0))

    in_specs = [
        batch_spec(S),
        batch_spec(Kp),
        const_spec((Kp, Kp)), const_spec((1, Kp)),
        const_spec((Kp, Kp)), const_spec((1, Kp)),
        const_spec((Kp, Kp)), const_spec((1, Kp)),
        const_spec((Kp, Ep)), const_spec((1, Ep)),
        const_spec((S, Ep)),
        const_spec((Ep, Ep)),
        const_spec((1, Ep)),
    ]
    out_spec = pl.BlockSpec((tm, Ep), lambda g: (g, 0))

    out_padded = pl.pallas_call(
        _userfm_kernel,
        out_shape=jax.ShapeDtypeStruct((Bp, Ep), f32),
        grid_spec=pltpu.PrefetchScalarGridSpec(
            num_scalar_prefetch=0,
            grid=grid,
            in_specs=in_specs,
            out_specs=out_spec,
        ),
        compiler_params=pltpu.CompilerParams(
            dimension_semantics=("parallel",),
        ),
    )(side_in, deep_in,
      prepped["w1"], prepped["b1"], prepped["w2"], prepped["b2"],
      prepped["w3"], prepped["b3"], prepped["w4"], prepped["b4"],
      prepped["w_side"], prepped["w_deepfc"], prepped["b_out"])

    return out_padded[:B, :E]


# -----------------------------------------------------------------------------
# Deterministic parameters matching the PyTorch module (Linear weights stored
# transposed as (in, out)).
# -----------------------------------------------------------------------------
def init_userfm_params(key, cat_sizes, embedding_size, dtype=jnp.float32):
    E = embedding_size
    ks = jax.random.split(key, 16)
    it = iter(ks)

    def xavier_uniform(k, shape):
        fan_out, fan_in = shape[0], shape[1]
        bound = (6.0 / (fan_in + fan_out)) ** 0.5
        return jax.random.uniform(k, shape, minval=-bound, maxval=bound, dtype=dtype)

    def linear(kw, kb, din, dout):
        bound = 1.0 / (din ** 0.5)
        w = jax.random.uniform(kw, (din, dout), minval=-bound, maxval=bound, dtype=dtype)
        b = jax.random.uniform(kb, (dout,), minval=-bound, maxval=bound, dtype=dtype)
        return w, b.reshape(1, dout)

    params = {
        "emb_city": xavier_uniform(next(it), (cat_sizes[0], E)),
        "emb_industry": xavier_uniform(next(it), (cat_sizes[1], E)),
        "emb_type": xavier_uniform(next(it), (cat_sizes[2], E)),
    }
    wf, bf = linear(next(it), next(it), FIRST_DIM, 1)
    params["w_first"] = wf.reshape(FIRST_DIM)
    params["b_first"] = bf.reshape(())
    for name, (din, dout) in (("1", (3 * E, 3 * E)), ("2", (3 * E, 3 * E)),
                              ("3", (3 * E, 3 * E)), ("4", (3 * E, E))):
        w, b = linear(next(it), next(it), din, dout)
        params["w" + name] = w
        params["b" + name] = b
    wfc_w, wfc_b = linear(next(it), next(it), 2 * E + 1, E)
    params["w_fc"] = wfc_w
    params["b_fc"] = wfc_b
    return params


# -----------------------------------------------------------------------------
# Pure-JAX reference following the PyTorch forward, with the same bf16
# matmul-operand / f32-accumulation contract (and the same first-order fold)
# as the kernel.
# -----------------------------------------------------------------------------
def userfm_reference(co_xv, ca_xv, ca_xi, params, *, embedding_size,
                     matmul_dtype=jnp.bfloat16):
    E = embedding_size
    f32 = jnp.float32

    def mm(a, w):
        return jnp.dot(a.astype(matmul_dtype), w.astype(matmul_dtype),
                       preferred_element_type=f32)

    first_x = jnp.concatenate(
        [co_xv[:, jnp.array(USERCO)].astype(f32),
         ca_xv[:, jnp.array(USERCA)].astype(f32)], axis=1)
    city = jnp.take(params["emb_city"], ca_xi[:, 0:4], axis=0).mean(axis=1)
    industry = jnp.take(params["emb_industry"], ca_xi[:, 5:9], axis=0).mean(axis=1)
    typ = jnp.take(params["emb_type"], ca_xi[:, 10:13], axis=0).mean(axis=1)

    second_embd = jnp.stack([city, industry, typ], axis=1)      # (B, 3, E)
    summed = second_embd.sum(axis=1)
    second_v = 0.5 * (summed ** 2 - (second_embd ** 2).sum(axis=1))

    y_deep = second_embd.reshape(-1, 3 * E)
    h = jnp.maximum(mm(y_deep, params["w1"]) + params["b1"], 0.0)
    h = jnp.maximum(mm(h, params["w2"]) + params["b2"], 0.0)
    h = jnp.maximum(mm(h, params["w3"]) + params["b3"], 0.0)
    deep_v = mm(h, params["w4"]) + params["b4"]

    wfc = jnp.asarray(params["w_fc"], f32)
    w_fold = params["w_first"].reshape(FIRST_DIM, 1).astype(f32) @ wfc[0:1]
    w_side = jnp.concatenate([w_fold, wfc[1:1 + E]], axis=0)    # (16+E, E)
    side_x = jnp.concatenate([first_x, second_v], axis=1)       # (B, 16+E)
    b_out = params["b_fc"].reshape(1, E) + params["b_first"] * wfc[0:1]
    return mm(side_x, w_side) + mm(deep_v, wfc[1 + E:]) + b_out


if __name__ == "__main__":
    key = jax.random.PRNGKey(0)
    k_co, k_ca, k_i1, k_i2, k_i3, k_p = jax.random.split(key, 6)

    batch = 32
    embedding_size = 16
    cat_sizes = (37, 23, 11)  # TODO(synk): real vocab sizes come from
                              # config.feature2idx_path; hardcoded in-script.

    co_xv = jax.random.normal(k_co, (batch, 9), dtype=jnp.float32)
    ca_xv = jax.random.normal(k_ca, (batch, 13), dtype=jnp.float32)
    ca_xi = jnp.concatenate(
        [jax.random.randint(k_i1, (batch, 5), 0, cat_sizes[0]),
         jax.random.randint(k_i2, (batch, 5), 0, cat_sizes[1]),
         jax.random.randint(k_i3, (batch, 3), 0, cat_sizes[2])],
        axis=1).astype(jnp.int32)

    params = init_userfm_params(k_p, cat_sizes, embedding_size)
    prepped = prepare_userfm_weights(params, embedding_size=embedding_size)

    fwd = jax.jit(functools.partial(userfm_forward, embedding_size=embedding_size))
    out = jax.block_until_ready(fwd(co_xv, ca_xv, ca_xi, params, prepped))

    ref = userfm_reference(co_xv, ca_xv, ca_xi, params,
                           embedding_size=embedding_size)

    assert out.shape == (batch, embedding_size), out.shape
    # tolerance covers bf16 operand rounding (reference mirrors the same casts)
    assert jnp.allclose(out, ref, atol=5e-3, rtol=5e-3), \
        float(jnp.max(jnp.abs(out - ref)))

    print("KERNEL_OK")
</pallas_src>

<mosaic_0001>
module attributes {stable_mosaic.version = 11 : i64} {
  func.func @_userfm_kernel(%arg0: i32, %arg1: memref<32x32xbf16, #tpu.memory_space<vmem>>, %arg2: memref<32x128xbf16, #tpu.memory_space<vmem>>, %arg3: memref<128x128xbf16, #tpu.memory_space<vmem>>, %arg4: memref<1x128xf32, #tpu.memory_space<vmem>>, %arg5: memref<128x128xbf16, #tpu.memory_space<vmem>>, %arg6: memref<1x128xf32, #tpu.memory_space<vmem>>, %arg7: memref<128x128xbf16, #tpu.memory_space<vmem>>, %arg8: memref<1x128xf32, #tpu.memory_space<vmem>>, %arg9: memref<128x128xbf16, #tpu.memory_space<vmem>>, %arg10: memref<1x128xf32, #tpu.memory_space<vmem>>, %arg11: memref<32x128xbf16, #tpu.memory_space<vmem>>, %arg12: memref<128x128xbf16, #tpu.memory_space<vmem>>, %arg13: memref<1x128xf32, #tpu.memory_space<vmem>>, %arg14: memref<32x128xf32, #tpu.memory_space<vmem>>) attributes {dimension_semantics = [#tpu.dimension_semantics<parallel>], iteration_bounds = array<i64: 1>, scalar_prefetch = 0 : i64, scratch_operands = 0 : i64, tpu.core_type = #tpu.core_type<tc>, window_params = [{transform_indices = @transform_0, window_bounds = array<i64: 32, 32>}, {transform_indices = @transform_1, window_bounds = array<i64: 32, 128>}, {pipeline_mode = #tpu.pipeline_mode<synchronous>, transform_indices = @transform_2, window_bounds = array<i64: 128, 128>}, {pipeline_mode = #tpu.pipeline_mode<synchronous>, transform_indices = @transform_3, window_bounds = array<i64: 1, 128>}, {pipeline_mode = #tpu.pipeline_mode<synchronous>, transform_indices = @transform_4, window_bounds = array<i64: 128, 128>}, {pipeline_mode = #tpu.pipeline_mode<synchronous>, transform_indices = @transform_5, window_bounds = array<i64: 1, 128>}, {pipeline_mode = #tpu.pipeline_mode<synchronous>, transform_indices = @transform_6, window_bounds = array<i64: 128, 128>}, {pipeline_mode = #tpu.pipeline_mode<synchronous>, transform_indices = @transform_7, window_bounds = array<i64: 1, 128>}, {pipeline_mode = #tpu.pipeline_mode<synchronous>, transform_indices = @transform_8, window_bounds = array<i64: 128, 128>}, {pipeline_mode = #tpu.pipeline_mode<synchronous>, transform_indices = @transform_9, window_bounds = array<i64: 1, 128>}, {pipeline_mode = #tpu.pipeline_mode<synchronous>, transform_indices = @transform_10, window_bounds = array<i64: 32, 128>}, {pipeline_mode = #tpu.pipeline_mode<synchronous>, transform_indices = @transform_11, window_bounds = array<i64: 128, 128>}, {pipeline_mode = #tpu.pipeline_mode<synchronous>, transform_indices = @transform_12, window_bounds = array<i64: 1, 128>}, {transform_indices = @transform_13, window_bounds = array<i64: 32, 128>}]} {
    %c0 = arith.constant 0 : index
    %c0_0 = arith.constant 0 : index
    %0 = vector.load %arg2[%c0, %c0_0] : memref<32x128xbf16, #tpu.memory_space<vmem>>, vector<32x128xbf16>
    %c0_1 = arith.constant 0 : index
    %c0_2 = arith.constant 0 : index
    %1 = vector.load %arg3[%c0_1, %c0_2] : memref<128x128xbf16, #tpu.memory_space<vmem>>, vector<128x128xbf16>
    %cst = arith.constant dense<0.000000e+00> : vector<32x128xf32>
    %2 = tpu.matmul %0, %1, %cst {dimension_numbers = #tpu.dot_dimension_numbers<[1], [0], [0], [1], [0, 0, 1, 1], [], []>} : vector<32x128xbf16>, vector<128x128xbf16>, vector<32x128xf32> -> vector<32x128xf32>
    %c0_3 = arith.constant 0 : index
    %c0_4 = arith.constant 0 : index
    %3 = vector.load %arg4[%c0_3, %c0_4] : memref<1x128xf32, #tpu.memory_space<vmem>>, vector<1x128xf32>
    %4 = vector.broadcast %3 : vector<1x128xf32> to vector<32x128xf32>
    %5 = arith.addf %2, %4 : vector<32x128xf32>
    %cst_5 = arith.constant 0.000000e+00 : f32
    %6 = vector.broadcast %cst_5 : f32 to vector<32x128xf32>
    %7 = arith.maximumf %5, %6 : vector<32x128xf32>
    %8 = arith.truncf %7 : vector<32x128xf32> to vector<32x128xbf16>
    %c0_6 = arith.constant 0 : index
    %c0_7 = arith.constant 0 : index
    %9 = vector.load %arg5[%c0_6, %c0_7] : memref<128x128xbf16, #tpu.memory_space<vmem>>, vector<128x128xbf16>
    %cst_8 = arith.constant dense<0.000000e+00> : vector<32x128xf32>
    %10 = tpu.matmul %8, %9, %cst_8 {dimension_numbers = #tpu.dot_dimension_numbers<[1], [0], [0], [1], [0, 0, 1, 1], [], []>} : vector<32x128xbf16>, vector<128x128xbf16>, vector<32x128xf32> -> vector<32x128xf32>
    %c0_9 = arith.constant 0 : index
    %c0_10 = arith.constant 0 : index
    %11 = vector.load %arg6[%c0_9, %c0_10] : memref<1x128xf32, #tpu.memory_space<vmem>>, vector<1x128xf32>
    %12 = vector.broadcast %11 : vector<1x128xf32> to vector<32x128xf32>
    %13 = arith.addf %10, %12 : vector<32x128xf32>
    %cst_11 = arith.constant 0.000000e+00 : f32
    %14 = vector.broadcast %cst_11 : f32 to vector<32x128xf32>
    %15 = arith.maximumf %13, %14 : vector<32x128xf32>
    %16 = arith.truncf %15 : vector<32x128xf32> to vector<32x128xbf16>
    %c0_12 = arith.constant 0 : index
    %c0_13 = arith.constant 0 : index
    %17 = vector.load %arg7[%c0_12, %c0_13] : memref<128x128xbf16, #tpu.memory_space<vmem>>, vector<128x128xbf16>
    %cst_14 = arith.constant dense<0.000000e+00> : vector<32x128xf32>
    %18 = tpu.matmul %16, %17, %cst_14 {dimension_numbers = #tpu.dot_dimension_numbers<[1], [0], [0], [1], [0, 0, 1, 1], [], []>} : vector<32x128xbf16>, vector<128x128xbf16>, vector<32x128xf32> -> vector<32x128xf32>
    %c0_15 = arith.constant 0 : index
    %c0_16 = arith.constant 0 : index
    %19 = vector.load %arg8[%c0_15, %c0_16] : memref<1x128xf32, #tpu.memory_space<vmem>>, vector<1x128xf32>
    %20 = vector.broadcast %19 : vector<1x128xf32> to vector<32x128xf32>
    %21 = arith.addf %18, %20 : vector<32x128xf32>
    %cst_17 = arith.constant 0.000000e+00 : f32
    %22 = vector.broadcast %cst_17 : f32 to vector<32x128xf32>
    %23 = arith.maximumf %21, %22 : vector<32x128xf32>
    %24 = arith.truncf %23 : vector<32x128xf32> to vector<32x128xbf16>
    %c0_18 = arith.constant 0 : index
    %c0_19 = arith.constant 0 : index
    %25 = vector.load %arg9[%c0_18, %c0_19] : memref<128x128xbf16, #tpu.memory_space<vmem>>, vector<128x128xbf16>
    %cst_20 = arith.constant dense<0.000000e+00> : vector<32x128xf32>
    %26 = tpu.matmul %24, %25, %cst_20 {dimension_numbers = #tpu.dot_dimension_numbers<[1], [0], [0], [1], [0, 0, 1, 1], [], []>} : vector<32x128xbf16>, vector<128x128xbf16>, vector<32x128xf32> -> vector<32x128xf32>
    %c0_21 = arith.constant 0 : index
    %c0_22 = arith.constant 0 : index
    %27 = vector.load %arg10[%c0_21, %c0_22] : memref<1x128xf32, #tpu.memory_space<vmem>>, vector<1x128xf32>
    %28 = vector.broadcast %27 : vector<1x128xf32> to vector<32x128xf32>
    %29 = arith.addf %26, %28 : vector<32x128xf32>
    %c0_23 = arith.constant 0 : index
    %c0_24 = arith.constant 0 : index
    %30 = vector.load %arg1[%c0_23, %c0_24] : memref<32x32xbf16, #tpu.memory_space<vmem>>, vector<32x32xbf16>
    %c0_25 = arith.constant 0 : index
    %c0_26 = arith.constant 0 : index
    %31 = vector.load %arg11[%c0_25, %c0_26] : memref<32x128xbf16, #tpu.memory_space<vmem>>, vector<32x128xbf16>
    %cst_27 = arith.constant dense<0.000000e+00> : vector<32x128xf32>
    %32 = tpu.matmul %30, %31, %cst_27 {dimension_numbers = #tpu.dot_dimension_numbers<[1], [0], [0], [1], [0, 0, 1, 1], [], []>} : vector<32x32xbf16>, vector<32x128xbf16>, vector<32x128xf32> -> vector<32x128xf32>
    %33 = arith.truncf %29 : vector<32x128xf32> to vector<32x128xbf16>
    %c0_28 = arith.constant 0 : index
    %c0_29 = arith.constant 0 : index
    %34 = vector.load %arg12[%c0_28, %c0_29] : memref<128x128xbf16, #tpu.memory_space<vmem>>, vector<128x128xbf16>
    %cst_30 = arith.constant dense<0.000000e+00> : vector<32x128xf32>
    %35 = tpu.matmul %33, %34, %cst_30 {dimension_numbers = #tpu.dot_dimension_numbers<[1], [0], [0], [1], [0, 0, 1, 1], [], []>} : vector<32x128xbf16>, vector<128x128xbf16>, vector<32x128xf32> -> vector<32x128xf32>
    %36 = arith.addf %32, %35 : vector<32x128xf32>
    %c0_31 = arith.constant 0 : index
    %c0_32 = arith.constant 0 : index
    %37 = vector.load %arg13[%c0_31, %c0_32] : memref<1x128xf32, #tpu.memory_space<vmem>>, vector<1x128xf32>
    %38 = vector.broadcast %37 : vector<1x128xf32> to vector<32x128xf32>
    %39 = arith.addf %36, %38 : vector<32x128xf32>
    %c0_33 = arith.constant 0 : index
    %c0_34 = arith.constant 0 : index
    %40 = vector.load %arg14[%c0_33, %c0_34] : memref<32x128xf32, #tpu.memory_space<vmem>>, vector<32x128xf32>
    tpu.vector_store %arg14[%c0_33, %c0_34], %39 {strides = array<i32>} : memref<32x128xf32, #tpu.memory_space<vmem>>, vector<32x128xf32>,
    return
  }
  func.func @transform_0(%arg0: i32) -> (i32, i32) {
    %c0_i32 = arith.constant 0 : i32
    %c0_i32_0 = arith.constant 0 : i32
    return %arg0, %c0_i32 : i32, i32
  }
  func.func @transform_1(%arg0: i32) -> (i32, i32) {
    %c0_i32 = arith.constant 0 : i32
    %c0_i32_0 = arith.constant 0 : i32
    return %arg0, %c0_i32 : i32, i32
  }
  func.func @transform_2(%arg0: i32) -> (i32, i32) {
    %c0_i32 = arith.constant 0 : i32
    %c0_i32_0 = arith.constant 0 : i32
    %c0_i32_1 = arith.constant 0 : i32
    return %c0_i32, %c0_i32_0 : i32, i32
  }
  func.func @transform_3(%arg0: i32) -> (i32, i32) {
    %c0_i32 = arith.constant 0 : i32
    %c0_i32_0 = arith.constant 0 : i32
    %c0_i32_1 = arith.constant 0 : i32
    return %c0_i32, %c0_i32_0 : i32, i32
  }
  func.func @transform_4(%arg0: i32) -> (i32, i32) {
    %c0_i32 = arith.constant 0 : i32
    %c0_i32_0 = arith.constant 0 : i32
    %c0_i32_1 = arith.constant 0 : i32
    return %c0_i32, %c0_i32_0 : i32, i32
  }
  func.func @transform_5(%arg0: i32) -> (i32, i32) {
    %c0_i32 = arith.constant 0 : i32
    %c0_i32_0 = arith.constant 0 : i32
    %c0_i32_1 = arith.constant 0 : i32
    return %c0_i32, %c0_i32_0 : i32, i32
  }
  func.func @transform_6(%arg0: i32) -> (i32, i32) {
    %c0_i32 = arith.constant 0 : i32
    %c0_i32_0 = arith.constant 0 : i32
    %c0_i32_1 = arith.constant 0 : i32
    return %c0_i32, %c0_i32_0 : i32, i32
  }
  func.func @transform_7(%arg0: i32) -> (i32, i32) {
    %c0_i32 = arith.constant 0 : i32
    %c0_i32_0 = arith.constant 0 : i32
    %c0_i32_1 = arith.constant 0 : i32
    return %c0_i32, %c0_i32_0 : i32, i32
  }
  func.func @transform_8(%arg0: i32) -> (i32, i32) {
    %c0_i32 = arith.constant 0 : i32
    %c0_i32_0 = arith.constant 0 : i32
    %c0_i32_1 = arith.constant 0 : i32
    return %c0_i32, %c0_i32_0 : i32, i32
  }
  func.func @transform_9(%arg0: i32) -> (i32, i32) {
    %c0_i32 = arith.constant 0 : i32
    %c0_i32_0 = arith.constant 0 : i32
    %c0_i32_1 = arith.constant 0 : i32
    return %c0_i32, %c0_i32_0 : i32, i32
  }
  func.func @transform_10(%arg0: i32) -> (i32, i32) {
    %c0_i32 = arith.constant 0 : i32
    %c0_i32_0 = arith.constant 0 : i32
    %c0_i32_1 = arith.constant 0 : i32
    return %c0_i32, %c0_i32_0 : i32, i32
  }
  func.func @transform_11(%arg0: i32) -> (i32, i32) {
    %c0_i32 = arith.constant 0 : i32
    %c0_i32_0 = arith.constant 0 : i32
    %c0_i32_1 = arith.constant 0 : i32
    return %c0_i32, %c0_i32_0 : i32, i32
  }
  func.func @transform_12(%arg0: i32) -> (i32, i32) {
    %c0_i32 = arith.constant 0 : i32
    %c0_i32_0 = arith.constant 0 : i32
    %c0_i32_1 = arith.constant 0 : i32
    return %c0_i32, %c0_i32_0 : i32, i32
  }
  func.func @transform_13(%arg0: i32) -> (i32, i32) {
    %c0_i32 = arith.constant 0 : i32
    %c0_i32_0 = arith.constant 0 : i32
    return %arg0, %c0_i32 : i32, i32
  }
}

</mosaic_0001>

<llo_original>
// kernel: userfm_forward.1
$region0: #{userfm_forward.1}
  #allocation0 [shape = 'u32[]', space=smem, size = 0x4, offset = 0x4, fixed_abs, tag = 'smem constant byte address 0x4 - core index']
  #allocation1 [shape = 'u32[144,128]{1,0:T(1,128)}', space=vmem, size = 0x12000, scoped, tag = 'internal scratch']
  %s0 = inlined_call_operand.vmem [shape: bf16[32,32], index: 0, kind: input, shape index: {}]
  %s1 = inlined_call_operand.vmem [shape: bf16[32,128], index: 1, kind: input, shape index: {}]
  %s2 = inlined_call_operand.vmem [shape: bf16[128,128], index: 2, kind: input, shape index: {}]
  %s3 = inlined_call_operand.vmem [shape: f32[1,128], index: 3, kind: input, shape index: {}]
  %s4 = inlined_call_operand.vmem [shape: bf16[128,128], index: 4, kind: input, shape index: {}]
  %s5 = inlined_call_operand.vmem [shape: f32[1,128], index: 5, kind: input, shape index: {}]
  %s6 = inlined_call_operand.vmem [shape: bf16[128,128], index: 6, kind: input, shape index: {}]
  %s7 = inlined_call_operand.vmem [shape: f32[1,128], index: 7, kind: input, shape index: {}]
  %s8 = inlined_call_operand.vmem [shape: bf16[128,128], index: 8, kind: input, shape index: {}]
  %s9 = inlined_call_operand.vmem [shape: f32[1,128], index: 9, kind: input, shape index: {}]
  %s10 = inlined_call_operand.vmem [shape: bf16[32,128], index: 10, kind: input, shape index: {}]
  %s11 = inlined_call_operand.vmem [shape: bf16[128,128], index: 11, kind: input, shape index: {}]
  %s12 = inlined_call_operand.vmem [shape: f32[1,128], index: 12, kind: input, shape index: {}]
  %s13 = inlined_call_operand.vmem [shape: f32[32,128], index: 13, kind: output, shape index: {}]
  %s14 = sld [smem:[#allocation0]]
  $region62: #{userfm_forward.1} parent=0
    _
  %s16 = ssub.s32 1, %s14
  %s17 = scalar_select 0, %s16, %s14
  // Predicated region
  $region2: #{userfm_forward.1} parent=0 // pred_check
    _
  $region3: #{userfm_forward.1} parent=0 // pred_check_branch
    %19 = sbr.rel (0) target = $region5
  $region4: #{userfm_forward.1} parent=0 // pred_region
    _
  $region5: #{userfm_forward.1} parent=0 // pred_fallthru
    _
  // Predicated region
  $region6: #{userfm_forward.1} parent=0 // pred_check
    _
  $region7: #{userfm_forward.1} parent=0 // pred_check_branch
    %21 = sbr.rel (0) target = $region9
  $region8: #{userfm_forward.1} parent=0 // pred_region
    _
  $region9: #{userfm_forward.1} parent=0 // pred_fallthru
    _
  // Predicated region
  $region10: #{userfm_forward.1} parent=0 // pred_check
    _
  $region11: #{userfm_forward.1} parent=0 // pred_check_branch
    %23 = sbr.rel (0) target = $region13
  $region12: #{userfm_forward.1} parent=0 // pred_region
    _
  $region13: #{userfm_forward.1} parent=0 // pred_fallthru
    _
  // Predicated region
  $region14: #{userfm_forward.1} parent=0 // pred_check
    _
  $region15: #{userfm_forward.1} parent=0 // pred_check_branch
    %25 = sbr.rel (0) target = $region17
  $region16: #{userfm_forward.1} parent=0 // pred_region
    _
  $region17: #{userfm_forward.1} parent=0 // pred_fallthru
    _
  // Predicated region
  $region18: #{userfm_forward.1} parent=0 // pred_check
    _
  $region19: #{userfm_forward.1} parent=0 // pred_check_branch
    %27 = sbr.rel (0) target = $region21
  $region20: #{userfm_forward.1} parent=0 // pred_region
    _
  $region21: #{userfm_forward.1} parent=0 // pred_fallthru
    _
  // Predicated region
  $region22: #{userfm_forward.1} parent=0 // pred_check
    _
  $region23: #{userfm_forward.1} parent=0 // pred_check_branch
    %29 = sbr.rel (0) target = $region25
  $region24: #{userfm_forward.1} parent=0 // pred_region
    _
  $region25: #{userfm_forward.1} parent=0 // pred_fallthru
    _
  // Predicated region
  $region26: #{userfm_forward.1} parent=0 // pred_check
    _
  $region27: #{userfm_forward.1} parent=0 // pred_check_branch
    %31 = sbr.rel (0) target = $region29
  $region28: #{userfm_forward.1} parent=0 // pred_region
    _
  $region29: #{userfm_forward.1} parent=0 // pred_fallthru
    _
  // Predicated region
  $region30: #{userfm_forward.1} parent=0 // pred_check
    _
  $region31: #{userfm_forward.1} parent=0 // pred_check_branch
    %33 = sbr.rel (0) target = $region33
  $region32: #{userfm_forward.1} parent=0 // pred_region
    _
  $region33: #{userfm_forward.1} parent=0 // pred_fallthru
    _
  // Predicated region
  $region34: #{userfm_forward.1} parent=0 // pred_check
    _
  $region35: #{userfm_forward.1} parent=0 // pred_check_branch
    %35 = sbr.rel (0) target = $region37
  $region36: #{userfm_forward.1} parent=0 // pred_region
    _
  $region37: #{userfm_forward.1} parent=0 // pred_fallthru
    _
  // Predicated region
  $region38: #{userfm_forward.1} parent=0 // pred_check
    _
  $region39: #{userfm_forward.1} parent=0 // pred_check_branch
    %37 = sbr.rel (0) target = $region41
  $region40: #{userfm_forward.1} parent=0 // pred_region
    _
  $region41: #{userfm_forward.1} parent=0 // pred_fallthru
    _
  // Predicated region
  $region42: #{userfm_forward.1} parent=0 // pred_check
    _
  $region43: #{userfm_forward.1} parent=0 // pred_check_branch
    %39 = sbr.rel (0) target = $region45
  $region44: #{userfm_forward.1} parent=0 // pred_region
    _
  $region45: #{userfm_forward.1} parent=0 // pred_fallthru
    _
  // Predicated region
  $region46: #{userfm_forward.1} parent=0 // pred_check
    _
  $region47: #{userfm_forward.1} parent=0 // pred_check_branch
    %41 = sbr.rel (0) target = $region49
  $region48: #{userfm_forward.1} parent=0 // pred_region
    _
  $region49: #{userfm_forward.1} parent=0 // pred_fallthru
    _
  // Predicated region
  $region50: #{userfm_forward.1} parent=0 // pred_check
    _
  $region51: #{userfm_forward.1} parent=0 // pred_check_branch
    %43 = sbr.rel (0) target = $region53
  $region52: #{userfm_forward.1} parent=0 // pred_region
    _
  $region53: #{userfm_forward.1} parent=0 // pred_fallthru
    _
  %v45 = vld [vmem:[%s1] sm:$0xf]
  %v46 = vld [vmem:[%s1 + $0x4] sm:$0xf]
  %v47 = vld [vmem:[%s1 + $0x8] sm:$0xf]
  %v48 = vld [vmem:[%s1 + $0xc] sm:$0xf]
  %v49 = vld [vmem:[%s2] sm:$0xf]
  %v50 = vld [vmem:[%s2 + $0x4] sm:$0xf]
  %v51 = vld [vmem:[%s2 + $0x8] sm:$0xf]
  %v52 = vld [vmem:[%s2 + $0xc] sm:$0xf]
  %v53 = vld [vmem:[%s2 + $0x10] sm:$0xf]
  %v54 = vld [vmem:[%s2 + $0x14] sm:$0xf]
  %v55 = vld [vmem:[%s2 + $0x18] sm:$0xf]
  %v56 = vld [vmem:[%s2 + $0x1c] sm:$0xf]
  %v57 = vld [vmem:[%s2 + $0x20] sm:$0xf]
  %v58 = vld [vmem:[%s2 + $0x24] sm:$0xf]
  %v59 = vld [vmem:[%s2 + $0x28] sm:$0xf]
  %v60 = vld [vmem:[%s2 + $0x2c] sm:$0xf]
  %v61 = vld [vmem:[%s2 + $0x30] sm:$0xf]
  %v62 = vld [vmem:[%s2 + $0x34] sm:$0xf]
  %v63 = vld [vmem:[%s2 + $0x38] sm:$0xf]
  %v64 = vld [vmem:[%s2 + $0x3c] sm:$0xf]
  %v65 = vld [vmem:[%s3] sm:$0x1]
  %v67 = vlaneseq
  %v68 = vshrl.u32 %v67, 7
  %v69 = vsub.s32 0, %v68
  %v70 = vrot.slane %v65, %v69
  %v76 = vunpack.c.l.b16 %v45
  %v77 = vunpack.c.l.b16 %v46
  %v78 = vunpack.c.l.b16 %v47
  %v79 = vunpack.c.l.b16 %v48
  %v80 = vpack.c.b16 %v77, %v76
  %v81 = vpack.c.b16 %v79, %v78
  %v100 = vunpack.c.l.b16 %v49
  %v101 = vunpack.c.l.b16 %v50
  %v102 = vunpack.c.l.b16 %v51
  %v103 = vunpack.c.l.b16 %v52
  %v104 = vunpack.c.l.b16 %v53
  %v105 = vunpack.c.l.b16 %v54
  %v106 = vunpack.c.l.b16 %v55
  %v107 = vunpack.c.l.b16 %v56
  %v108 = vunpack.c.l.b16 %v57
  %v109 = vunpack.c.l.b16 %v58
  %v110 = vunpack.c.l.b16 %v59
  %v111 = vunpack.c.l.b16 %v60
  %v112 = vunpack.c.l.b16 %v61
  %v113 = vunpack.c.l.b16 %v62
  %v114 = vunpack.c.l.b16 %v63
  %v115 = vunpack.c.l.b16 %v64
  %v116 = vpack.c.b16 %v101, %v100
  %v117 = vpack.c.b16 %v103, %v102
  %v118 = vpack.c.b16 %v105, %v104
  %v119 = vpack.c.b16 %v107, %v106
  %v120 = vpack.c.b16 %v109, %v108
  %v121 = vpack.c.b16 %v111, %v110
  %v122 = vpack.c.b16 %v113, %v112
  %v123 = vpack.c.b16 %v115, %v114
  %132 = vmatprep.subr.bf16.mxu0 0
  %133 = vmatpush1.bf16.msra.mxu0 %v116
  %134 = vmatprep.subr.bf16.mxu0 0
  %135 = vmatpush1.bf16.msra.mxu0 %v117
  %136 = vmatprep.subr.bf16.mxu0 0
  %137 = vmatpush1.bf16.msra.mxu0 %v118
  %138 = vmatprep.subr.bf16.mxu0 0
  %139 = vmatpush1.bf16.msra.mxu0 %v119
  %140 = vmatprep.subr.bf16.mxu0 0
  %141 = vmatpush1.bf16.msra.mxu0 %v120
  %142 = vmatprep.subr.bf16.mxu0 0
  %143 = vmatpush1.bf16.msra.mxu0 %v121
  %144 = vmatprep.subr.bf16.mxu0 0
  %145 = vmatpush1.bf16.msra.mxu0 %v122
  %146 = vmatprep.subr.bf16.mxu0 0
  %147 = vmatpush1.bf16.msra.mxu0 %v123
  %148 = vmatprep.subr.bf16.mxu0 0
  %149 = vmatpush1.bf16.msra.mxu0 0
  %150 = vmatprep.subr.bf16.mxu0 0
  %151 = vmatpush1.bf16.msra.mxu0 0
  %152 = vmatprep.subr.bf16.mxu0 0
  %153 = vmatpush1.bf16.msra.mxu0 0
  %154 = vmatprep.subr.bf16.mxu0 0
  %155 = vmatpush1.bf16.msra.mxu0 0
  %156 = vmatprep.subr.bf16.mxu0 0
  %157 = vmatpush1.bf16.msra.mxu0 0
  %158 = vmatprep.subr.bf16.mxu0 0
  %159 = vmatpush1.bf16.msra.mxu0 0
  %160 = vmatprep.subr.bf16.mxu0 0
  %161 = vmatpush1.bf16.msra.mxu0 0
  %162 = vmatprep.subr.bf16.mxu0 0
  %163 = vmatpush1.bf16.msra.mxu0 0
  %164 = vmatprep.mubr.bf16.mxu0 0
  %165 = vmatmul.mubr.bf16.gmra.mrb[0].mxu0 %v80
  %v166 = vpop.f32.mrb[0].mxu0
  %v167 = vadd.f32 %v70, %v166
  %v168 = vpop.f32.mrb[0].mxu0
  %v169 = vpop.f32.mrb[0].mxu0
  %v170 = vadd.f32 %v70, %v169
  %v171 = vpop.f32.mrb[0].mxu0
  %172 = vmatprep.mubr.bf16.mxu0 0
  %173 = vmatmul.mubr.bf16.gmra.mrb[0].mxu0 %v81
  %v174 = vpop.f32.mrb[0].mxu0
  %v175 = vadd.f32 %v70, %v174
  %v176 = vpop.f32.mrb[0].mxu0
  %v177 = vpop.f32.mrb[0].mxu0
  %v178 = vadd.f32 %v70, %v177
  %v179 = vpop.f32.mrb[0].mxu0
  %180 = vdwg.mxu0
  %v181 = vmax.f32 %v167, 0.0
  %v182 = vmax.f32 %v170, 0.0
  %v183 = vmax.f32 %v175, 0.0
  %v184 = vmax.f32 %v178, 0.0
  %v185 = vpack.c.bf16 %v182, %v181
  %v186 = vpack.c.bf16 %v184, %v183
  %v187 = vld [vmem:[%s4] sm:$0xf]
  %v188 = vld [vmem:[%s4 + $0x4] sm:$0xf]
  %v189 = vld [vmem:[%s4 + $0x8] sm:$0xf]
  %v190 = vld [vmem:[%s4 + $0xc] sm:$0xf]
  %v191 = vld [vmem:[%s4 + $0x10] sm:$0xf]
  %v192 = vld [vmem:[%s4 + $0x14] sm:$0xf]
  %v193 = vld [vmem:[%s4 + $0x18] sm:$0xf]
  %v194 = vld [vmem:[%s4 + $0x1c] sm:$0xf]
  %v195 = vld [vmem:[%s4 + $0x20] sm:$0xf]
  %v196 = vld [vmem:[%s4 + $0x24] sm:$0xf]
  %v197 = vld [vmem:[%s4 + $0x28] sm:$0xf]
  %v198 = vld [vmem:[%s4 + $0x2c] sm:$0xf]
  %v199 = vld [vmem:[%s4 + $0x30] sm:$0xf]
  %v200 = vld [vmem:[%s4 + $0x34] sm:$0xf]
  %v201 = vld [vmem:[%s4 + $0x38] sm:$0xf]
  %v202 = vld [vmem:[%s4 + $0x3c] sm:$0xf]
  %v203 = vld [vmem:[%s5] sm:$0x1]
  %v205 = vlaneseq
  %v206 = vshrl.u32 %v205, 7
  %v207 = vsub.s32 0, %v206
  %v208 = vrot.slane %v203, %v207
  %v226 = vunpack.c.l.b16 %v187
  %v227 = vunpack.c.l.b16 %v188
  %v228 = vunpack.c.l.b16 %v189
  %v229 = vunpack.c.l.b16 %v190
  %v230 = vunpack.c.l.b16 %v191
  %v231 = vunpack.c.l.b16 %v192
  %v232 = vunpack.c.l.b16 %v193
  %v233 = vunpack.c.l.b16 %v194
  %v234 = vunpack.c.l.b16 %v195
  %v235 = vunpack.c.l.b16 %v196
  %v236 = vunpack.c.l.b16 %v197
  %v237 = vunpack.c.l.b16 %v198
  %v238 = vunpack.c.l.b16 %v199
  %v239 = vunpack.c.l.b16 %v200
  %v240 = vunpack.c.l.b16 %v201
  %v241 = vunpack.c.l.b16 %v202
  %v242 = vpack.c.b16 %v227, %v226
  %v243 = vpack.c.b16 %v229, %v228
  %v244 = vpack.c.b16 %v231, %v230
  %v245 = vpack.c.b16 %v233, %v232
  %v246 = vpack.c.b16 %v235, %v234
  %v247 = vpack.c.b16 %v237, %v236
  %v248 = vpack.c.b16 %v239, %v238
  %v249 = vpack.c.b16 %v241, %v240
  %258 = vmatprep.subr.bf16.mxu0 0
  %259 = vmatpush1.bf16.msra.mxu0 %v242
  %260 = vmatprep.subr.bf16.mxu0 0
  %261 = vmatpush1.bf16.msra.mxu0 %v243
  %262 = vmatprep.subr.bf16.mxu0 0
  %263 = vmatpush1.bf16.msra.mxu0 %v244
  %264 = vmatprep.subr.bf16.mxu0 0
  %265 = vmatpush1.bf16.msra.mxu0 %v245
  %266 = vmatprep.subr.bf16.mxu0 0
  %267 = vmatpush1.bf16.msra.mxu0 %v246
  %268 = vmatprep.subr.bf16.mxu0 0
  %269 = vmatpush1.bf16.msra.mxu0 %v247
  %270 = vmatprep.subr.bf16.mxu0 0
  %271 = vmatpush1.bf16.msra.mxu0 %v248
  %272 = vmatprep.subr.bf16.mxu0 0
  %273 = vmatpush1.bf16.msra.mxu0 %v249
  %274 = vmatprep.subr.bf16.mxu0 0
  %275 = vmatpush1.bf16.msra.mxu0 0
  %276 = vmatprep.subr.bf16.mxu0 0
  %277 = vmatpush1.bf16.msra.mxu0 0
  %278 = vmatprep.subr.bf16.mxu0 0
  %279 = vmatpush1.bf16.msra.mxu0 0
  %280 = vmatprep.subr.bf16.mxu0 0
  %281 = vmatpush1.bf16.msra.mxu0 0
  %282 = vmatprep.subr.bf16.mxu0 0
  %283 = vmatpush1.bf16.msra.mxu0 0
  %284 = vmatprep.subr.bf16.mxu0 0
  %285 = vmatpush1.bf16.msra.mxu0 0
  %286 = vmatprep.subr.bf16.mxu0 0
  %287 = vmatpush1.bf16.msra.mxu0 0
  %288 = vmatprep.subr.bf16.mxu0 0
  %289 = vmatpush1.bf16.msra.mxu0 0
  %290 = vmatprep.mubr.bf16.mxu0 0
  %291 = vmatmul.mubr.bf16.gmra.mrb[0].mxu0 %v185
  %v292 = vpop.f32.mrb[0].mxu0
  %v293 = vadd.f32 %v208, %v292
  %v294 = vpop.f32.mrb[0].mxu0
  %v295 = vpop.f32.mrb[0].mxu0
  %v296 = vadd.f32 %v208, %v295
  %v297 = vpop.f32.mrb[0].mxu0
  %298 = vmatprep.mubr.bf16.mxu0 0
  %299 = vmatmul.mubr.bf16.gmra.mrb[0].mxu0 %v186
  %v300 = vpop.f32.mrb[0].mxu0
  %v301 = vadd.f32 %v208, %v300
  %v302 = vpop.f32.mrb[0].mxu0
  %v303 = vpop.f32.mrb[0].mxu0
  %v304 = vadd.f32 %v208, %v303
  %v305 = vpop.f32.mrb[0].mxu0
  %306 = vdwg.mxu0
  %v307 = vmax.f32 %v293, 0.0
  %v308 = vmax.f32 %v296, 0.0
  %v309 = vmax.f32 %v301, 0.0
  %v310 = vmax.f32 %v304, 0.0
  %v311 = vpack.c.bf16 %v308, %v307
  %v312 = vpack.c.bf16 %v310, %v309
  %v313 = vld [vmem:[%s6] sm:$0xf]
  %v314 = vld [vmem:[%s6 + $0x4] sm:$0xf]
  %v315 = vld [vmem:[%s6 + $0x8] sm:$0xf]
  %v316 = vld [vmem:[%s6 + $0xc] sm:$0xf]
  %v317 = vld [vmem:[%s6 + $0x10] sm:$0xf]
  %v318 = vld [vmem:[%s6 + $0x14] sm:$0xf]
  %v319 = vld [vmem:[%s6 + $0x18] sm:$0xf]
  %v320 = vld [vmem:[%s6 + $0x1c] sm:$0xf]
  %v321 = vld [vmem:[%s6 + $0x20] sm:$0xf]
  %v322 = vld [vmem:[%s6 + $0x24] sm:$0xf]
  %v323 = vld [vmem:[%s6 + $0x28] sm:$0xf]
  %v324 = vld [vmem:[%s6 + $0x2c] sm:$0xf]
  %v325 = vld [vmem:[%s6 + $0x30] sm:$0xf]
  %v326 = vld [vmem:[%s6 + $0x34] sm:$0xf]
  %v327 = vld [vmem:[%s6 + $0x38] sm:$0xf]
  %v328 = vld [vmem:[%s6 + $0x3c] sm:$0xf]
  %v329 = vld [vmem:[%s7] sm:$0x1]
  %v331 = vlaneseq
  %v332 = vshrl.u32 %v331, 7
  %v333 = vsub.s32 0, %v332
  %v334 = vrot.slane %v329, %v333
  %v352 = vunpack.c.l.b16 %v313
  %v353 = vunpack.c.l.b16 %v314
  %v354 = vunpack.c.l.b16 %v315
  %v355 = vunpack.c.l.b16 %v316
  %v356 = vunpack.c.l.b16 %v317
  %v357 = vunpack.c.l.b16 %v318
  %v358 = vunpack.c.l.b16 %v319
  %v359 = vunpack.c.l.b16 %v320
  %v360 = vunpack.c.l.b16 %v321
  %v361 = vunpack.c.l.b16 %v322
  %v362 = vunpack.c.l.b16 %v323
  %v363 = vunpack.c.l.b16 %v324
  %v364 = vunpack.c.l.b16 %v325
  %v365 = vunpack.c.l.b16 %v326
  %v366 = vunpack.c.l.b16 %v327
  %v367 = vunpack.c.l.b16 %v328
  %v368 = vpack.c.b16 %v353, %v352
  %v369 = vpack.c.b16 %v355, %v354
  %v370 = vpack.c.b16 %v357, %v356
  %v371 = vpack.c.b16 %v359, %v358
  %v372 = vpack.c.b16 %v361, %v360
  %v373 = vpack.c.b16 %v363, %v362
  %v374 = vpack.c.b16 %v365, %v364
  %v375 = vpack.c.b16 %v367, %v366
  %384 = vmatprep.subr.bf16.mxu0 0
  %385 = vmatpush1.bf16.msra.mxu0 %v368
  %386 = vmatprep.subr.bf16.mxu0 0
  %387 = vmatpush1.bf16.msra.mxu0 %v369
  %388 = vmatprep.subr.bf16.mxu0 0
  %389 = vmatpush1.bf16.msra.mxu0 %v370
  %390 = vmatprep.subr.bf16.mxu0 0
  %391 = vmatpush1.bf16.msra.mxu0 %v371
  %392 = vmatprep.subr.bf16.mxu0 0
  %393 = vmatpush1.bf16.msra.mxu0 %v372
  %394 = vmatprep.subr.bf16.mxu0 0
  %395 = vmatpush1.bf16.msra.mxu0 %v373
  %396 = vmatprep.subr.bf16.mxu0 0
  %397 = vmatpush1.bf16.msra.mxu0 %v374
  %398 = vmatprep.subr.bf16.mxu0 0
  %399 = vmatpush1.bf16.msra.mxu0 %v375
  %400 = vmatprep.subr.bf16.mxu0 0
  %401 = vmatpush1.bf16.msra.mxu0 0
  %402 = vmatprep.subr.bf16.mxu0 0
  %403 = vmatpush1.bf16.msra.mxu0 0
  %404 = vmatprep.subr.bf16.mxu0 0
  %405 = vmatpush1.bf16.msra.mxu0 0
  %406 = vmatprep.subr.bf16.mxu0 0
  %407 = vmatpush1.bf16.msra.mxu0 0
  %408 = vmatprep.subr.bf16.mxu0 0
  %409 = vmatpush1.bf16.msra.mxu0 0
  %410 = vmatprep.subr.bf16.mxu0 0
  %411 = vmatpush1.bf16.msra.mxu0 0
  %412 = vmatprep.subr.bf16.mxu0 0
  %413 = vmatpush1.bf16.msra.mxu0 0
  %414 = vmatprep.subr.bf16.mxu0 0
  %415 = vmatpush1.bf16.msra.mxu0 0
  %416 = vmatprep.mubr.bf16.mxu0 0
  %417 = vmatmul.mubr.bf16.gmra.mrb[0].mxu0 %v311
  %v418 = vpop.f32.mrb[0].mxu0
  %v419 = vadd.f32 %v334, %v418
  %v420 = vpop.f32.mrb[0].mxu0
  %v421 = vpop.f32.mrb[0].mxu0
  %v422 = vadd.f32 %v334, %v421
  %v423 = vpop.f32.mrb[0].mxu0
  %424 = vmatprep.mubr.bf16.mxu0 0
  %425 = vmatmul.mubr.bf16.gmra.mrb[0].mxu0 %v312
  %v426 = vpop.f32.mrb[0].mxu0
  %v427 = vadd.f32 %v334, %v426
  %v428 = vpop.f32.mrb[0].mxu0
  %v429 = vpop.f32.mrb[0].mxu0
  %v430 = vadd.f32 %v334, %v429
  %v431 = vpop.f32.mrb[0].mxu0
  %432 = vdwg.mxu0
  %v433 = vmax.f32 %v419, 0.0
  %v434 = vmax.f32 %v422, 0.0
  %v435 = vmax.f32 %v427, 0.0
  %v436 = vmax.f32 %v430, 0.0
  %v437 = vpack.c.bf16 %v434, %v433
  %v438 = vpack.c.bf16 %v436, %v435
  %v439 = vld [vmem:[%s8] sm:$0xf]
  %v440 = vld [vmem:[%s8 + $0x4] sm:$0xf]
  %v441 = vld [vmem:[%s8 + $0x8] sm:$0xf]
  %v442 = vld [vmem:[%s8 + $0xc] sm:$0xf]
  %v443 = vld [vmem:[%s8 + $0x10] sm:$0xf]
  %v444 = vld [vmem:[%s8 + $0x14] sm:$0xf]
  %v445 = vld [vmem:[%s8 + $0x18] sm:$0xf]
  %v446 = vld [vmem:[%s8 + $0x1c] sm:$0xf]
  %v447 = vld [vmem:[%s8 + $0x20] sm:$0xf]
  %v448 = vld [vmem:[%s8 + $0x24] sm:$0xf]
  %v449 = vld [vmem:[%s8 + $0x28] sm:$0xf]
  %v450 = vld [vmem:[%s8 + $0x2c] sm:$0xf]
  %v451 = vld [vmem:[%s8 + $0x30] sm:$0xf]
  %v452 = vld [vmem:[%s8 + $0x34] sm:$0xf]
  %v453 = vld [vmem:[%s8 + $0x38] sm:$0xf]
  %v454 = vld [vmem:[%s8 + $0x3c] sm:$0xf]
  %v455 = vld [vmem:[%s9] sm:$0x1]
  %v457 = vlaneseq
  %v458 = vshrl.u32 %v457, 7
  %v459 = vsub.s32 0, %v458
  %v460 = vrot.slane %v455, %v459
  %v478 = vunpack.c.l.b16 %v439
  %v479 = vunpack.c.l.b16 %v440
  %v480 = vunpack.c.l.b16 %v441
  %v481 = vunpack.c.l.b16 %v442
  %v482 = vunpack.c.l.b16 %v443
  %v483 = vunpack.c.l.b16 %v444
  %v484 = vunpack.c.l.b16 %v445
  %v485 = vunpack.c.l.b16 %v446
  %v486 = vunpack.c.l.b16 %v447
  %v487 = vunpack.c.l.b16 %v448
  %v488 = vunpack.c.l.b16 %v449
  %v489 = vunpack.c.l.b16 %v450
  %v490 = vunpack.c.l.b16 %v451
  %v491 = vunpack.c.l.b16 %v452
  %v492 = vunpack.c.l.b16 %v453
  %v493 = vunpack.c.l.b16 %v454
  %v494 = vpack.c.b16 %v479, %v478
  %v495 = vpack.c.b16 %v481, %v480
  %v496 = vpack.c.b16 %v483, %v482
  %v497 = vpack.c.b16 %v485, %v484
  %v498 = vpack.c.b16 %v487, %v486
  %v499 = vpack.c.b16 %v489, %v488
  %v500 = vpack.c.b16 %v491, %v490
  %v501 = vpack.c.b16 %v493, %v492
  %510 = vmatprep.subr.bf16.mxu0 0
  %511 = vmatpush1.bf16.msra.mxu0 %v494
  %512 = vmatprep.subr.bf16.mxu0 0
  %513 = vmatpush1.bf16.msra.mxu0 %v495
  %514 = vmatprep.subr.bf16.mxu0 0
  %515 = vmatpush1.bf16.msra.mxu0 %v496
  %516 = vmatprep.subr.bf16.mxu0 0
  %517 = vmatpush1.bf16.msra.mxu0 %v497
  %518 = vmatprep.subr.bf16.mxu0 0
  %519 = vmatpush1.bf16.msra.mxu0 %v498
  %520 = vmatprep.subr.bf16.mxu0 0
  %521 = vmatpush1.bf16.msra.mxu0 %v499
  %522 = vmatprep.subr.bf16.mxu0 0
  %523 = vmatpush1.bf16.msra.mxu0 %v500
  %524 = vmatprep.subr.bf16.mxu0 0
  %525 = vmatpush1.bf16.msra.mxu0 %v501
  %526 = vmatprep.subr.bf16.mxu0 0
  %527 = vmatpush1.bf16.msra.mxu0 0
  %528 = vmatprep.subr.bf16.mxu0 0
  %529 = vmatpush1.bf16.msra.mxu0 0
  %530 = vmatprep.subr.bf16.mxu0 0
  %531 = vmatpush1.bf16.msra.mxu0 0
  %532 = vmatprep.subr.bf16.mxu0 0
  %533 = vmatpush1.bf16.msra.mxu0 0
  %534 = vmatprep.subr.bf16.mxu0 0
  %535 = vmatpush1.bf16.msra.mxu0 0
  %536 = vmatprep.subr.bf16.mxu0 0
  %537 = vmatpush1.bf16.msra.mxu0 0
  %538 = vmatprep.subr.bf16.mxu0 0
  %539 = vmatpush1.bf16.msra.mxu0 0
  %540 = vmatprep.subr.bf16.mxu0 0
  %541 = vmatpush1.bf16.msra.mxu0 0
  %542 = vmatprep.mubr.bf16.mxu0 0
  %543 = vmatmul.mubr.bf16.gmra.mrb[0].mxu0 %v437
  %v544 = vpop.f32.mrb[0].mxu0
  %v545 = vadd.f32 %v460, %v544
  %v546 = vpop.f32.mrb[0].mxu0
  %v547 = vpop.f32.mrb[0].mxu0
  %v548 = vadd.f32 %v460, %v547
  %v549 = vpop.f32.mrb[0].mxu0
  %550 = vmatprep.mubr.bf16.mxu0 0
  %551 = vmatmul.mubr.bf16.gmra.mrb[0].mxu0 %v438
  %v552 = vpop.f32.mrb[0].mxu0
  %v553 = vadd.f32 %v460, %v552
  %v554 = vpop.f32.mrb[0].mxu0
  %v555 = vpop.f32.mrb[0].mxu0
  %v556 = vadd.f32 %v460, %v555
  %v557 = vpop.f32.mrb[0].mxu0
  %558 = vdwg.mxu0
  %v559 = vld [vmem:[%s0] sm:$0xf]
  %v560 = vld [vmem:[%s0 + $0x4] sm:$0xf]
  %v561 = vld [vmem:[%s0 + $0x8] sm:$0xf]
  %v562 = vld [vmem:[%s0 + $0xc] sm:$0xf]
  %v563 = vld [vmem:[%s10] sm:$0xf]
  %v564 = vld [vmem:[%s10 + $0x4] sm:$0xf]
  %v565 = vld [vmem:[%s10 + $0x8] sm:$0xf]
  %v566 = vld [vmem:[%s10 + $0xc] sm:$0xf]
  %v567 = vpack.c.bf16 %v548, %v545
  %v568 = vpack.c.bf16 %v556, %v553
  %v569 = vld [vmem:[%s11] sm:$0xf]
  %v570 = vld [vmem:[%s11 + $0x4] sm:$0xf]
  %v571 = vld [vmem:[%s11 + $0x8] sm:$0xf]
  %v572 = vld [vmem:[%s11 + $0xc] sm:$0xf]
  %v573 = vld [vmem:[%s11 + $0x10] sm:$0xf]
  %v574 = vld [vmem:[%s11 + $0x14] sm:$0xf]
  %v575 = vld [vmem:[%s11 + $0x18] sm:$0xf]
  %v576 = vld [vmem:[%s11 + $0x1c] sm:$0xf]
  %v577 = vld [vmem:[%s11 + $0x20] sm:$0xf]
  %v578 = vld [vmem:[%s11 + $0x24] sm:$0xf]
  %v579 = vld [vmem:[%s11 + $0x28] sm:$0xf]
  %v580 = vld [vmem:[%s11 + $0x2c] sm:$0xf]
  %v581 = vld [vmem:[%s11 + $0x30] sm:$0xf]
  %v582 = vld [vmem:[%s11 + $0x34] sm:$0xf]
  %v583 = vld [vmem:[%s11 + $0x38] sm:$0xf]
  %v584 = vld [vmem:[%s11 + $0x3c] sm:$0xf]
  %v601 = vunpack.c.l.b16 %v569
  %v602 = vunpack.c.l.b16 %v570
  %v603 = vunpack.c.l.b16 %v571
  %v604 = vunpack.c.l.b16 %v572
  %v605 = vunpack.c.l.b16 %v573
  %v606 = vunpack.c.l.b16 %v574
  %v607 = vunpack.c.l.b16 %v575
  %v608 = vunpack.c.l.b16 %v576
  %v609 = vunpack.c.l.b16 %v577
  %v610 = vunpack.c.l.b16 %v578
  %v611 = vunpack.c.l.b16 %v579
  %v612 = vunpack.c.l.b16 %v580
  %v613 = vunpack.c.l.b16 %v581
  %v614 = vunpack.c.l.b16 %v582
  %v615 = vunpack.c.l.b16 %v583
  %v616 = vunpack.c.l.b16 %v584
  %v617 = vpack.c.b16 %v602, %v601
  %v618 = vpack.c.b16 %v604, %v603
  %v619 = vpack.c.b16 %v606, %v605
  %v620 = vpack.c.b16 %v608, %v607
  %v621 = vpack.c.b16 %v610, %v609
  %v622 = vpack.c.b16 %v612, %v611
  %v623 = vpack.c.b16 %v614, %v613
  %v624 = vpack.c.b16 %v616, %v615
  %633 = vmatprep.subr.bf16.mxu0 0
  %634 = vmatpush1.bf16.msra.mxu0 %v617
  %635 = vmatprep.subr.bf16.mxu0 0
  %636 = vmatpush1.bf16.msra.mxu0 %v618
  %637 = vmatprep.subr.bf16.mxu0 0
  %638 = vmatpush1.bf16.msra.mxu0 %v619
  %639 = vmatprep.subr.bf16.mxu0 0
  %640 = vmatpush1.bf16.msra.mxu0 %v620
  %641 = vmatprep.subr.bf16.mxu0 0
  %642 = vmatpush1.bf16.msra.mxu0 %v621
  %643 = vmatprep.subr.bf16.mxu0 0
  %644 = vmatpush1.bf16.msra.mxu0 %v622
  %645 = vmatprep.subr.bf16.mxu0 0
  %646 = vmatpush1.bf16.msra.mxu0 %v623
  %647 = vmatprep.subr.bf16.mxu0 0
  %648 = vmatpush1.bf16.msra.mxu0 %v624
  %649 = vmatprep.subr.bf16.mxu0 0
  %650 = vmatpush1.bf16.msra.mxu0 0
  %651 = vmatprep.subr.bf16.mxu0 0
  %652 = vmatpush1.bf16.msra.mxu0 0
  %653 = vmatprep.subr.bf16.mxu0 0
  %654 = vmatpush1.bf16.msra.mxu0 0
  %655 = vmatprep.subr.bf16.mxu0 0
  %656 = vmatpush1.bf16.msra.mxu0 0
  %657 = vmatprep.subr.bf16.mxu0 0
  %658 = vmatpush1.bf16.msra.mxu0 0
  %659 = vmatprep.subr.bf16.mxu0 0
  %660 = vmatpush1.bf16.msra.mxu0 0
  %661 = vmatprep.subr.bf16.mxu0 0
  %662 = vmatpush1.bf16.msra.mxu0 0
  %663 = vmatprep.subr.bf16.mxu0 0
  %664 = vmatpush1.bf16.msra.mxu0 0
  %665 = vmatprep.mubr.bf16.mxu0 0
  %666 = vmatmul.mubr.bf16.gmra.mrb[0].mxu0 %v567
  %v667 = vpop.f32.mrb[0].mxu0
  %v668 = vadd.f32 0.0, %v667
  %v669 = vpop.f32.mrb[0].mxu0
  %v670 = vpop.f32.mrb[0].mxu0
  %v671 = vadd.f32 0.0, %v670
  %v672 = vpop.f32.mrb[0].mxu0
  %673 = vmatprep.mubr.bf16.mxu0 0
  %674 = vmatmul.mubr.bf16.gmra.mrb[0].mxu0 %v568
  %v675 = vpop.f32.mrb[0].mxu0
  %v676 = vadd.f32 0.0, %v675
  %v677 = vpop.f32.mrb[0].mxu0
  %v678 = vpop.f32.mrb[0].mxu0
  %v679 = vadd.f32 0.0, %v678
  %v680 = vpop.f32.mrb[0].mxu0
  %681 = vdwg.mxu0
  %v686 = vunpack.c.l.b16 %v559
  %v687 = vunpack.c.l.b16 %v560
  %v688 = vunpack.c.l.b16 %v561
  %v689 = vunpack.c.l.b16 %v562
  %v690 = vpack.c.b16 %v687, %v686
  %v691 = vpack.c.b16 %v689, %v688
  %v696 = vunpack.c.l.b16 %v563
  %v697 = vunpack.c.l.b16 %v564
  %v698 = vunpack.c.l.b16 %v565
  %v699 = vunpack.c.l.b16 %v566
  %v700 = vpack.c.b16 %v697, %v696
  %v701 = vpack.c.b16 %v699, %v698
  %vm704 = vcmask 261120
  %v706 = vsel %vm704, %v690, 0
  %v709 = vsel %vm704, %v691, 0
  %711 = vmatprep.subr.bf16.mxu0 0
  %712 = vmatpush1.bf16.msra.mxu0 %v700
  %713 = vmatprep.subr.bf16.mxu0 0
  %714 = vmatpush1.bf16.msra.mxu0 %v701
  %715 = vmatprep.subr.bf16.mxu0 0
  %716 = vmatpush1.bf16.msra.mxu0 0
  %717 = vmatprep.subr.bf16.mxu0 0
  %718 = vmatpush1.bf16.msra.mxu0 0
  %719 = vmatprep.subr.bf16.mxu0 0
  %720 = vmatpush1.bf16.msra.mxu0 0
  %721 = vmatprep.subr.bf16.mxu0 0
  %722 = vmatpush1.bf16.msra.mxu0 0
  %723 = vmatprep.subr.bf16.mxu0 0
  %724 = vmatpush1.bf16.msra.mxu0 0
  %725 = vmatprep.subr.bf16.mxu0 0
  %726 = vmatpush1.bf16.msra.mxu0 0
  %727 = vmatprep.subr.bf16.mxu0 0
  %728 = vmatpush1.bf16.msra.mxu0 0
  %729 = vmatprep.subr.bf16.mxu0 0
  %730 = vmatpush1.bf16.msra.mxu0 0
  %731 = vmatprep.subr.bf16.mxu0 0
  %732 = vmatpush1.bf16.msra.mxu0 0
  %733 = vmatprep.subr.bf16.mxu0 0
  %734 = vmatpush1.bf16.msra.mxu0 0
  %735 = vmatprep.subr.bf16.mxu0 0
  %736 = vmatpush1.bf16.msra.mxu0 0
  %737 = vmatprep.subr.bf16.mxu0 0
  %738 = vmatpush1.bf16.msra.mxu0 0
  %739 = vmatprep.subr.bf16.mxu0 0
  %740 = vmatpush1.bf16.msra.mxu0 0
  %741 = vmatprep.subr.bf16.mxu0 0
  %742 = vmatpush1.bf16.msra.mxu0 0
  %743 = vmatprep.mubr.bf16.mxu0 0
  %744 = vmatmul.mubr.bf16.gmra.mrb[0].mxu0 %v706
  %v745 = vpop.f32.mrb[0].mxu0
  %v746 = vadd.f32 %v668, %v745
  %v747 = vpop.f32.mrb[0].mxu0
  %v748 = vpop.f32.mrb[0].mxu0
  %v749 = vadd.f32 %v671, %v748
  %v750 = vpop.f32.mrb[0].mxu0
  %751 = vmatprep.mubr.bf16.mxu0 0
  %752 = vmatmul.mubr.bf16.gmra.mrb[0].mxu0 %v709
  %v753 = vpop.f32.mrb[0].mxu0
  %v754 = vadd.f32 %v676, %v753
  %v755 = vpop.f32.mrb[0].mxu0
  %v756 = vpop.f32.mrb[0].mxu0
  %v757 = vadd.f32 %v679, %v756
  %v758 = vpop.f32.mrb[0].mxu0
  %759 = vdwg.mxu0
  %v760 = vld [vmem:[%s12] sm:$0x1]
  %v762 = vlaneseq
  %v763 = vshrl.u32 %v762, 7
  %v764 = vsub.s32 0, %v763
  %v765 = vrot.slane %v760, %v764
  %v767 = vadd.f32 %v746, %v765
  %v768 = vadd.f32 %v749, %v765
  %v769 = vadd.f32 %v754, %v765
  %v770 = vadd.f32 %v757, %v765
  %771 = vst [vmem:[%s13] sm:$0xff] %v767
  %772 = vst [vmem:[%s13 + $0x8] sm:$0xff] %v768
  %773 = vst [vmem:[%s13 + $0x10] sm:$0xff] %v769
  %774 = vst [vmem:[%s13 + $0x18] sm:$0xff] %v770
  // Predicated region
  $region54: #{userfm_forward.1} parent=0 // pred_check
    _
  $region55: #{userfm_forward.1} parent=0 // pred_check_branch
    %776 = sbr.rel (0) target = $region57
  $region56: #{userfm_forward.1} parent=0 // pred_region
    _
  $region57: #{userfm_forward.1} parent=0 // pred_fallthru
    _
  // Predicated region
  $region58: #{userfm_forward.1} parent=0 // pred_check
    _
  $region59: #{userfm_forward.1} parent=0 // pred_check_branch
    %778 = sbr.rel (0) target = $region61
  $region60: #{userfm_forward.1} parent=0 // pred_region
    _
  $region61: #{userfm_forward.1} parent=0 // pred_fallthru
    _

</llo_original>
